<compile_context>
chip_gen: v7x
topology: tpu7x:2x2x1
jax: 0.10.0
libtpu: 0.0.40
codegen_flags: <defaults>
</compile_context>

<pallas_src>
import jax
import jax.numpy as jnp
from jax import lax
from jax.experimental import pallas as pl
from jax.experimental.pallas import tpu as pltpu


_LANE = 128
_SUB = 8                                  # f32 sublane granularity of the accumulator
_TARGET_BLOCK_BYTES = 4 * 1024 * 1024     # per input per grid step (~4 MiB)


def _round_up(a: int, b: int) -> int:
    return ((a + b - 1) // b) * b


def _num_partitions() -> int:
    """2 independent partial sums on multi-TensorCore chips, else 1."""
    try:
        kind = jax.devices()[0].device_kind.lower()
    except Exception:
        return 1
    if any(t in kind for t in ("v7", "tpu7", "v4", "v5p")):
        return 2
    return 1


def _make_psnr_kernel(block_rows: int, rows: int, steps_per_part: int,
                      needs_mask: bool):
    def kernel(x_ref, y_ref, out_ref, acc_ref):
        j = pl.program_id(1)

        @pl.when(j == 0)
        def _():
            acc_ref[...] = jnp.zeros_like(acc_ref)

        d = x_ref[...].astype(jnp.float32) - y_ref[...].astype(jnp.float32)

        if needs_mask:
            # Global block id for this (p, j) step; rows beyond `rows` are
            # either a partial trailing block or an "overhang" block of the
            # last partition (whose DMA was clamped) -> zero them out.
            gb = pl.program_id(0) * steps_per_part + j
            valid = rows - gb * block_rows
            row_idx = lax.broadcasted_iota(jnp.int32, (block_rows, _LANE), 0)
            d = jnp.where(row_idx < valid, d, 0.0)

        sq = d * d
        # Fold the (block_rows, 128) tile into the (8, 128) partial-sum vreg
        # with pure VPU adds (reduction over the leading, non-tiled axis).
        acc_ref[...] += sq.reshape(block_rows // _SUB, _SUB, _LANE).sum(axis=0)

        @pl.when(j == pl.num_programs(1) - 1)
        def _():
            # Single cross-lane/sublane reduce per partition.
            out_ref[0, 0] = jnp.sum(acc_ref[...])

    return kernel


def psnr_loss(x: jax.Array, y: jax.Array) -> jax.Array:
    """Pallas implementation of PSNRLoss.forward. Returns a scalar f32."""
    assert x.shape == y.shape
    n = int(x.size)
    itemsize = int(jnp.dtype(x.dtype).itemsize)
    sub_mult = max(_SUB, 32 // itemsize)          # 8 f32 / 16 bf16 / 32 int8

    rows = pl.cdiv(n, _LANE)
    lane_padded_n = rows * _LANE

    xf = x.reshape(-1)
    yf = y.reshape(-1)
    if lane_padded_n != n:
        # Rare case: flat size not a multiple of 128 lanes.  Pad only to the
        # next lane multiple (zeros contribute 0 to the squared-diff sum).
        xf = jnp.pad(xf, (0, lane_padded_n - n))
        yf = jnp.pad(yf, (0, lane_padded_n - n))
    x2 = xf.reshape(rows, _LANE)
    y2 = yf.reshape(rows, _LANE)

    # Block sizing: ~constant bytes per step regardless of dtype, rounded to
    # the dtype's sublane multiple; never larger than the (rounded) row count.
    target_rows = max(sub_mult, _TARGET_BLOCK_BYTES // (_LANE * itemsize))
    target_rows = _round_up(target_rows, sub_mult)
    block_rows = min(target_rows, _round_up(rows, sub_mult))

    nblocks = pl.cdiv(rows, block_rows)
    num_parts = min(_num_partitions(), nblocks)
    steps = pl.cdiv(nblocks, num_parts)

    # Masking is only needed if a block can extend past the valid rows.
    needs_mask = (rows % block_rows != 0) or (num_parts * steps != nblocks)

    def in_map(p, j):
        # Clamp so "overhang" blocks of the last partition never point a DMA
        # past the array; their contribution is masked to zero in-kernel.
        return (jnp.minimum(p * steps + j, nblocks - 1), 0)

    cost = pl.CostEstimate(
        flops=3 * n,
        transcendentals=0,
        bytes_accessed=2 * n * itemsize + 8 * num_parts,
    )

    partials = pl.pallas_call(
        _make_psnr_kernel(block_rows, rows, steps, needs_mask),
        out_shape=jax.ShapeDtypeStruct((num_parts, 1), jnp.float32),
        grid_spec=pltpu.PrefetchScalarGridSpec(
            num_scalar_prefetch=0,
            grid=(num_parts, steps),
            in_specs=[
                pl.BlockSpec((block_rows, _LANE), in_map),
                pl.BlockSpec((block_rows, _LANE), in_map),
            ],
            out_specs=pl.BlockSpec(
                (1, 1),
                lambda p, j: (p, 0),
                memory_space=pltpu.MemorySpace.SMEM,
            ),
            scratch_shapes=[pltpu.VMEM((_SUB, _LANE), jnp.float32)],
        ),
        compiler_params=pltpu.CompilerParams(
            dimension_semantics=("parallel", "arbitrary"),
            # 2 inputs x 2 buffers x 4 MiB = 16 MiB of input buffers; raise the
            # scoped limit explicitly so v5e (16 MiB default) doesn't OOM.
            vmem_limit_bytes=48 * 1024 * 1024,
        ),
        cost_estimate=cost,
    )(x2, y2)

    mse = jnp.sum(partials) / jnp.float32(n)
    # -10*log10(1/mse) == 10*log10(mse); negligible one-time epilogue in JAX.
    return jnp.float32(10.0) * jnp.log10(mse)


if __name__ == "__main__":
    key = jax.random.PRNGKey(0)
    kx, ky = jax.random.split(key)
    # NCHW, small shapes
    x = jax.random.uniform(kx, (2, 4, 16, 16), dtype=jnp.float32)
    y = jax.random.uniform(ky, (2, 4, 16, 16), dtype=jnp.float32)

    loss = jax.jit(psnr_loss)(x, y)
    jax.block_until_ready(loss)

    # reference check (plain JAX)
    mse_ref = jnp.mean((x - y) ** 2)
    ref = 10.0 * jnp.log10(mse_ref)
    assert jnp.allclose(loss, ref, rtol=1e-5, atol=1e-5), (loss, ref)

    print("KERNEL_OK")
</pallas_src>

<mosaic_0001>
module attributes {stable_mosaic.version = 11 : i64} {
  func.func @kernel(%arg0: i32, %arg1: i32, %arg2: memref<16x128xf32, #tpu.memory_space<vmem>>, %arg3: memref<16x128xf32, #tpu.memory_space<vmem>>, %arg4: memref<1x1xf32, #tpu.memory_space<smem>>, %arg5: memref<8x128xf32, #tpu.memory_space<vmem>>) attributes {dimension_semantics = [#tpu.dimension_semantics<parallel>, #tpu.dimension_semantics<arbitrary>], iteration_bounds = array<i64: 1, 1>, scalar_prefetch = 0 : i64, scratch_operands = 1 : i64, tpu.core_type = #tpu.core_type<tc>, window_params = [{transform_indices = @transform_0, window_bounds = array<i64: 16, 128>}, {transform_indices = @transform_1, window_bounds = array<i64: 16, 128>}, {transform_indices = @transform_2, window_bounds = array<i64: 1, 1>}]} {
    %c0_i32 = arith.constant 0 : i32
    %0 = arith.cmpi eq, %arg1, %c0_i32 : i32
    %1 = arith.extui %0 : i1 to i32
    %c0_i32_0 = arith.constant 0 : i32
    %2 = arith.cmpi ne, %1, %c0_i32_0 : i32
    scf.if %2 {
      %cst_10 = arith.constant 0.000000e+00 : f32
      %15 = vector.broadcast %cst_10 : f32 to vector<8x128xf32>
      %c0_11 = arith.constant 0 : index
      %c0_12 = arith.constant 0 : index
      %16 = vector.load %arg5[%c0_11, %c0_12] : memref<8x128xf32, #tpu.memory_space<vmem>>, vector<8x128xf32>
      tpu.vector_store %arg5[%c0_11, %c0_12], %15 {strides = array<i32>} : memref<8x128xf32, #tpu.memory_space<vmem>>, vector<8x128xf32>,
    } else {
    }
    %c0 = arith.constant 0 : index
    %c0_1 = arith.constant 0 : index
    %3 = vector.load %arg2[%c0, %c0_1] : memref<16x128xf32, #tpu.memory_space<vmem>>, vector<16x128xf32>
    %c0_2 = arith.constant 0 : index
    %c0_3 = arith.constant 0 : index
    %4 = vector.load %arg3[%c0_2, %c0_3] : memref<16x128xf32, #tpu.memory_space<vmem>>, vector<16x128xf32>
    %5 = arith.subf %3, %4 : vector<16x128xf32>
    %6 = arith.mulf %5, %5 : vector<16x128xf32>
    %c0_4 = arith.constant 0 : index
    %c0_5 = arith.constant 0 : index
    %7 = vector.load %arg5[%c0_4, %c0_5] : memref<8x128xf32, #tpu.memory_space<vmem>>, vector<8x128xf32>
    %8 = vector.shape_cast %6 : vector<16x128xf32> to vector<2x8x128xf32>
    %cst = arith.constant dense<0.000000e+00> : vector<8x128xf32>
    %9 = vector.multi_reduction <add>, %8, %cst [0] : vector<2x8x128xf32> to vector<8x128xf32>
    %10 = arith.addf %7, %9 : vector<8x128xf32>
    %c0_6 = arith.constant 0 : index
    %c0_7 = arith.constant 0 : index
    %11 = vector.load %arg5[%c0_6, %c0_7] : memref<8x128xf32, #tpu.memory_space<vmem>>, vector<8x128xf32>
    tpu.vector_store %arg5[%c0_6, %c0_7], %10 {strides = array<i32>} : memref<8x128xf32, #tpu.memory_space<vmem>>, vector<8x128xf32>,
    %c0_i32_8 = arith.constant 0 : i32
    %12 = arith.cmpi eq, %arg1, %c0_i32_8 : i32
    %13 = arith.extui %12 : i1 to i32
    %c0_i32_9 = arith.constant 0 : i32
    %14 = arith.cmpi ne, %13, %c0_i32_9 : i32
    scf.if %14 {
      %c0_10 = arith.constant 0 : index
      %c0_11 = arith.constant 0 : index
      %15 = vector.load %arg5[%c0_10, %c0_11] : memref<8x128xf32, #tpu.memory_space<vmem>>, vector<8x128xf32>
      %16 = vector.shape_cast %15 : vector<8x128xf32> to vector<1x8x128xf32>
      %cst_12 = arith.constant dense<0.000000e+00> : vector<1xf32>
      %17 = vector.multi_reduction <add>, %16, %cst_12 [1, 2] : vector<1x8x128xf32> to vector<1xf32>
      %18 = vector.shape_cast %17 : vector<1xf32> to vector<1x1x1xf32>
      %19 = vector.extract %18[0, 0, 0] : f32 from vector<1x1x1xf32>
      %c0_13 = arith.constant 0 : index
      %c0_14 = arith.constant 0 : index
      %20 = memref.load %arg4[%c0_13, %c0_14] : memref<1x1xf32, #tpu.memory_space<smem>>
      memref.store %19, %arg4[%c0_13, %c0_14] : memref<1x1xf32, #tpu.memory_space<smem>>
    } else {
    }
    return
  }
  func.func @transform_0(%arg0: i32, %arg1: i32) -> (i32, i32) {
    %c1_i32 = arith.constant 1 : i32
    %0 = arith.muli %arg0, %c1_i32 : i32
    %1 = arith.addi %0, %arg1 : i32
    %c0_i32 = arith.constant 0 : i32
    %2 = arith.minsi %1, %c0_i32 : i32
    %c0_i32_0 = arith.constant 0 : i32
    %c0_i32_1 = arith.constant 0 : i32
    return %2, %c0_i32_0 : i32, i32
  }
  func.func @transform_1(%arg0: i32, %arg1: i32) -> (i32, i32) {
    %c1_i32 = arith.constant 1 : i32
    %0 = arith.muli %arg0, %c1_i32 : i32
    %1 = arith.addi %0, %arg1 : i32
    %c0_i32 = arith.constant 0 : i32
    %2 = arith.minsi %1, %c0_i32 : i32
    %c0_i32_0 = arith.constant 0 : i32
    %c0_i32_1 = arith.constant 0 : i32
    return %2, %c0_i32_0 : i32, i32
  }
  func.func @transform_2(%arg0: i32, %arg1: i32) -> (i32, i32) {
    %c0_i32 = arith.constant 0 : i32
    %c0_i32_0 = arith.constant 0 : i32
    return %arg0, %c0_i32 : i32, i32
  }
}

</mosaic_0001>

<llo_original>
// kernel: psnr_loss.1
$region0: #{psnr_loss.1}
  #allocation0 [shape = 'u32[]', space=smem, size = 0x4, offset = 0x4, fixed_abs, tag = 'smem constant byte address 0x4 - core index']
  #allocation1 [shape = 'u32[144,128]{1,0:T(1,128)}', space=vmem, size = 0x12000, scoped, tag = 'internal scratch']
  #allocation2 [shape = 'f32[8,128]{1,0:T(8,128)}', space=vmem, size = 0x1000, scoped, tag = 'scratch operand']
  %s0 = inlined_call_operand.vmem [shape: f32[16,128], index: 0, kind: input, shape index: {}]
  %s1 = inlined_call_operand.vmem [shape: f32[16,128], index: 1, kind: input, shape index: {}]
  %s2 = inlined_call_operand.hbm [shape: f32[1,1], index: 2, kind: output, shape index: {}]
  %s3 = sld [smem:[#allocation0]]
  $region26: #{psnr_loss.1} parent=0
    _
  %s5 = ssub.s32 1, %s3
  %s6 = scalar_select 0, %s5, %s3
  $region1: #{psnr_loss.1} parent=0
    #allocation3 [shape = 'u8[512]{0}', space=smem, size = 0x200, scoped, tag = 'output window, operand 0, single buffered']
    #allocation4 [shape = 's32[1]{0}', space=sflag, size = 0x4, scoped, tag = 'scoped memory for psnr_loss.1']
    %7 = vsyncpa [#allocation4], 0
    // Predicated region
    $region2: #{psnr_loss.1} parent=1 // pred_check
      _
    $region3: #{psnr_loss.1} parent=1 // pred_check_branch
      %9 = sbr.rel (0) target = $region5
    $region4: #{psnr_loss.1} parent=1 // pred_region
      %s10 = sadd.s32 0, 0
      %p11 = scmp.lt.s32.totalorder %s10, 0
      %s12 = scalar_select %p11, %s10, 0
      %s13 = smul.u32 2, %s12
      %p14 = scmp.lt.s32.totalorder %s13, 1
      %s15 = scalar_select %p14, %s13, 1
      %s16 = smul.addr %s15, 8
      %s17 = scalar_lea.vmem %s0, %s16
      %s18 = sadd.s32 0, 0
      %p19 = scmp.lt.s32.totalorder %s18, 0
      %s20 = scalar_select %p19, %s18, 0
      %s21 = smul.u32 2, %s20
    $region5: #{psnr_loss.1} parent=1 // pred_fallthru
      _
    // Predicated region
    $region6: #{psnr_loss.1} parent=1 // pred_check
      _
    $region7: #{psnr_loss.1} parent=1 // pred_check_branch
      %23 = sbr.rel (0) target = $region9
    $region8: #{psnr_loss.1} parent=1 // pred_region
      %s24 = sadd.s32 0, 0
      %p25 = scmp.lt.s32.totalorder %s24, 0
      %s26 = scalar_select %p25, %s24, 0
      %s27 = smul.u32 2, %s26
      %p28 = scmp.lt.s32.totalorder %s27, 1
      %s29 = scalar_select %p28, %s27, 1
      %s30 = smul.addr %s29, 8
      %s31 = scalar_lea.vmem %s1, %s30
      %s32 = sadd.s32 0, 0
      %p33 = scmp.lt.s32.totalorder %s32, 0
      %s34 = scalar_select %p33, %s32, 0
      %s35 = smul.u32 2, %s34
    $region9: #{psnr_loss.1} parent=1 // pred_fallthru
      _
    %s36 = sadd.s32 0, 0
    %p37 = scmp.lt.s32.totalorder %s36, 0
    %s38 = scalar_select %p37, %s36, 0
    %s39 = smul.u32 2, %s38
    %p40 = scmp.lt.s32.totalorder %s39, 1
    %s41 = scalar_select %p40, %s39, 1
    %s42 = smul.addr %s41, 8
    %s43 = scalar_lea.vmem %s0, %s42
    %s44 = sadd.s32 0, 0
    %p45 = scmp.lt.s32.totalorder %s44, 0
    %s46 = scalar_select %p45, %s44, 0
    %s47 = smul.u32 2, %s46
    %p48 = scmp.lt.s32.totalorder %s47, 1
    %s49 = scalar_select %p48, %s47, 1
    %s50 = smul.addr %s49, 8
    %s51 = scalar_lea.vmem %s1, %s50
    %s52 = sadd.s32 0, 0
    %p53 = scmp.lt.s32.totalorder %s52, 0
    %s54 = scalar_select %p53, %s52, 0
    %s55 = smul.u32 2, %s54
    %p56 = scmp.lt.s32.totalorder %s55, 1
    %s57 = scalar_select %p56, %s55, 1
    %s58 = smul.addr %s57, 8
    %s59 = scalar_lea.vmem %s0, %s58
    %s60 = sadd.s32 0, 0
    %p61 = scmp.lt.s32.totalorder %s60, 0
    %s62 = scalar_select %p61, %s60, 0
    %s63 = smul.u32 2, %s62
    %s64 = sadd.s32 0, 0
    %p65 = scmp.lt.s32.totalorder %s64, 0
    %s66 = scalar_select %p65, %s64, 0
    %s67 = smul.u32 2, %s66
    %p68 = scmp.lt.s32.totalorder %s67, 1
    %s69 = scalar_select %p68, %s67, 1
    %s70 = smul.addr %s69, 8
    %s71 = scalar_lea.vmem %s1, %s70
    %s72 = sadd.s32 0, 0
    %p73 = scmp.lt.s32.totalorder %s72, 0
    %s74 = scalar_select %p73, %s72, 0
    %s75 = smul.u32 2, %s74
    %p76 = scmp.eq.s32.totalorder 0, 0
    // Predicated region
    $region10: #{psnr_loss.1} parent=1 // pred_check
      %p77 = pneg %p76
    $region11: #{psnr_loss.1} parent=1 // pred_check_branch
      %79 = sbr.rel (%p77) target = $region13
    $region12: #{psnr_loss.1} parent=1 // pred_region
      %80 = vst [vmem:[#allocation2] sm:$0xff] 0.0
    $region13: #{psnr_loss.1} parent=1 // pred_fallthru
      _
    %v81 = vld [vmem:[%s59] sm:$0xff]
    %v82 = vld [vmem:[%s59 + $0x8] sm:$0xff]
    %v83 = vld [vmem:[%s71] sm:$0xff]
    %v84 = vld [vmem:[%s71 + $0x8] sm:$0xff]
    %v85 = vsub.f32 %v81, %v83
    %v86 = vsub.f32 %v82, %v84
    %v87 = vmul.f32 %v85, %v85
    %v88 = vmul.f32 %v86, %v86
    %v89 = vld [vmem:[#allocation2] sm:$0xff]
    %v90 = vadd.f32 %v87, %v88
    %v91 = vadd.f32 %v89, %v90
    %92 = vst [vmem:[#allocation2] sm:$0xff] %v91
    // Predicated region
    $region14: #{psnr_loss.1} parent=1 // pred_check
      %p93 = pneg %p76
    $region15: #{psnr_loss.1} parent=1 // pred_check_branch
      %95 = sbr.rel (%p93) target = $region17
    $region16: #{psnr_loss.1} parent=1 // pred_region
      %v96 = vld [vmem:[#allocation2] sm:$0xff]
      %97 = vadd.xlane.f32.xlu0 %v96
      %v98 = vpop.xlane.xlu0 %97
      %v99 = vrot.slane %v98, 4
      %v100 = vadd.f32 %v98, %v99
      %v101 = vrot.slane %v100, 2
      %v102 = vadd.f32 %v100, %v101
      %v103 = vrot.slane %v102, 1
      %v104 = vadd.f32 %v102, %v103
      %s105 = vtos %v104
      %s106 = scalar_lea.smem [#allocation3], 0
      %107 = sst [smem:[%s106]] %s105
    $region17: #{psnr_loss.1} parent=1 // pred_fallthru
      _
    // Predicated region
    $region18: #{psnr_loss.1} parent=1 // pred_check
      _
    $region19: #{psnr_loss.1} parent=1 // pred_check_branch
      %109 = sbr.rel (0) target = $region21
    $region20: #{psnr_loss.1} parent=1 // pred_region
      %s111 = ssub.s32 16, 16
      %112 = vsyncadd [#allocation4], %s111
      %115 = dma.smem_to_hbm [#allocation3], 16, %s2, [#allocation4]
    $region21: #{psnr_loss.1} parent=1 // pred_fallthru
      _
    // Predicated region
    $region22: #{psnr_loss.1} parent=1 // pred_check
      _
    $region23: #{psnr_loss.1} parent=1 // pred_check_branch
      %117 = sbr.rel (0) target = $region25
    $region24: #{psnr_loss.1} parent=1 // pred_region
      %118 = dma.done [#allocation4], 16
    $region25: #{psnr_loss.1} parent=1 // pred_fallthru
      _
    %119 = sfence
    %120 = vsyncpa [#allocation4], 1

</llo_original>
